<compile_context>
chip_gen: v5e
topology: v5e:2x2
jax: 0.10.0
libtpu: 0.0.40
codegen_flags: <defaults>
</compile_context>

<pallas_src>
import functools

import jax
import jax.numpy as jnp
from jax.experimental import pallas as pl
from jax.experimental.pallas import tpu as pltpu


def encode_linear_kernel(xt_ref, w1_ref, b1_ref, w2_ref, b2_ref, out_ref):
    # xt_ref : (dim_in,  TILE_B)  bf16   -- x^T tile (lane axis = batch)
    # w1_ref : (dim_out, dim_in)  bf16   -- PyTorch Linear weight layout
    # b1_ref : (dim_out, 1)       f32
    # w2_ref : (dim_out, dim_out) bf16
    # b2_ref : (dim_out, 1)       f32
    # out_ref: (dim_out, TILE_B)  out_dtype
    h = jnp.dot(w1_ref[...], xt_ref[...], preferred_element_type=jnp.float32)
    h = jnp.maximum(h + b1_ref[...], 0.0)          # bias + ReLU in f32 (VPU)
    h = h.astype(w2_ref.dtype)                     # bf16 feed for 2nd MXU pass
    y = jnp.dot(w2_ref[...], h, preferred_element_type=jnp.float32)
    y = jnp.maximum(y + b2_ref[...], 0.0)
    out_ref[...] = y.astype(out_ref.dtype)


def _pick_batch_tile(batch, tile_b):
    """Lane-axis tile: full extent if batch <= 128, else a multiple of 128,
    chosen so the grid has >= 2 steps (keeps both v7x TensorCores busy)."""
    if batch <= 128:
        return batch
    tb = max(128, (min(tile_b, batch) // 128) * 128)
    if tb >= batch:                       # would collapse to a 1-step grid
        tb = max(128, ((batch // 2) // 128) * 128)
    return tb


@functools.partial(jax.jit, static_argnames=("tile_b", "compute_dtype", "out_dtype"))
def encode_linear_forward(x, w1, b1, w2, b2, *, tile_b=4096,
                          compute_dtype=jnp.bfloat16, out_dtype=None):
    """Fused EncodeLinear forward.

    x  : (B, dim_in)          activations
    w1 : (dim_out, dim_in)    first Linear weight (PyTorch layout)
    b1 : (dim_out,)           first Linear bias
    w2 : (dim_out, dim_out)   second Linear weight
    b2 : (dim_out,)           second Linear bias
    Returns (B, dim_out) in out_dtype (defaults to x.dtype).
    """
    batch, dim_in = x.shape
    dim_out = w1.shape[0]
    assert w1.shape == (dim_out, dim_in)
    assert w2.shape == (dim_out, dim_out)
    if out_dtype is None:
        out_dtype = x.dtype

    tb = _pick_batch_tile(batch, tile_b)
    grid = (pl.cdiv(batch, tb),)

    # Feature-major, bf16-streamed operands (layout plumbing only).
    xt = x.T.astype(compute_dtype)                      # (dim_in, B)
    w1c = w1.astype(compute_dtype)
    w2c = w2.astype(compute_dtype)
    b1c = b1.reshape(dim_out, 1).astype(jnp.float32)    # bias/ReLU stay f32
    b2c = b2.reshape(dim_out, 1).astype(jnp.float32)

    dt_in = jnp.finfo(compute_dtype).bits // 8
    dt_out = jnp.finfo(out_dtype).bits // 8
    weight_bytes = (w1c.size + w2c.size) * dt_in + (b1c.size + b2c.size) * 4
    io_bytes = batch * dim_in * dt_in + batch * dim_out * dt_out + weight_bytes
    flops = 2 * batch * (dim_in + dim_out) * dim_out

    # VMEM budget: double-buffered x^T / out^T tiles + (double-buffered)
    # resident weights + f32/bf16 intermediate h, with 2x headroom, clamped to
    # the v7x physical ceiling.
    tile_bytes = (2 * dim_in * tb * dt_in            # x^T  (double buffered)
                  + 2 * dim_out * tb * dt_out        # out^T (double buffered)
                  + dim_out * tb * (4 + dt_in)       # h in f32 + bf16 copy
                  + 2 * weight_bytes)
    vmem_limit = int(min(64 * 1024 * 1024, max(32 * 1024 * 1024, 2 * tile_bytes)))

    out_t = pl.pallas_call(
        encode_linear_kernel,
        out_shape=jax.ShapeDtypeStruct((dim_out, batch), out_dtype),
        grid=grid,
        in_specs=[
            # x^T: tiled along the batch (lane) axis, double-buffered by Pallas.
            pl.BlockSpec((dim_in, tb), lambda i: (0, i)),
            # Weights / biases: constant index_map -> DMA'd once, resident.
            pl.BlockSpec((dim_out, dim_in), lambda i: (0, 0)),
            pl.BlockSpec((dim_out, 1), lambda i: (0, 0)),
            pl.BlockSpec((dim_out, dim_out), lambda i: (0, 0)),
            pl.BlockSpec((dim_out, 1), lambda i: (0, 0)),
        ],
        out_specs=pl.BlockSpec((dim_out, tb), lambda i: (0, i)),
        compiler_params=pltpu.CompilerParams(
            dimension_semantics=("parallel",),
            vmem_limit_bytes=vmem_limit,
        ),
        cost_estimate=pl.CostEstimate(
            flops=flops, transcendentals=0, bytes_accessed=io_bytes),
    )(xt, w1c, b1c, w2c, b2c)

    return out_t.T


if __name__ == "__main__":
    key = jax.random.PRNGKey(0)
    k_x, k_w1, k_b1, k_w2, k_b2 = jax.random.split(key, 5)

    # Small shapes consistent with the module: batch=8, dim_in=16, dim_out=32.
    B, dim_in, dim_out = 8, 16, 32

    x = jax.random.normal(k_x, (B, dim_in), dtype=jnp.float32)
    # PyTorch nn.Linear layouts: weight (out, in), bias (out,).
    w1 = jax.random.normal(k_w1, (dim_out, dim_in), dtype=jnp.float32) * 0.1
    b1 = jax.random.normal(k_b1, (dim_out,), dtype=jnp.float32) * 0.1
    w2 = jax.random.normal(k_w2, (dim_out, dim_out), dtype=jnp.float32) * 0.1
    b2 = jax.random.normal(k_b2, (dim_out,), dtype=jnp.float32) * 0.1

    def reference(xv):
        # f32 reference through the same bf16-streaming casts the kernel uses.
        xb = xv.astype(jnp.bfloat16).astype(jnp.float32)
        w1b = w1.astype(jnp.bfloat16).astype(jnp.float32)
        w2b = w2.astype(jnp.bfloat16).astype(jnp.float32)
        h = jnp.maximum(xb @ w1b.T + b1, 0.0)
        h = h.astype(jnp.bfloat16).astype(jnp.float32)
        return jnp.maximum(h @ w2b.T + b2, 0.0)

    out = jax.block_until_ready(encode_linear_forward(x, w1, b1, w2, b2))
    assert out.shape == (B, dim_out) and out.dtype == x.dtype
    assert jnp.allclose(out, reference(x), atol=2e-2, rtol=2e-2)

    # Also exercise the multi-step (tiled, megacore-splittable) path.
    x_big = jax.random.normal(key, (512, dim_in), dtype=jnp.float32)
    out_big = jax.block_until_ready(encode_linear_forward(x_big, w1, b1, w2, b2))
    assert out_big.shape == (512, dim_out)
    assert jnp.allclose(out_big, reference(x_big), atol=2e-2, rtol=2e-2)

    print("KERNEL_OK")
</pallas_src>

<mosaic_0001>
module attributes {stable_mosaic.version = 11 : i64} {
  func.func @encode_linear_kernel(%arg0: i32, %arg1: memref<16x8xbf16, #tpu.memory_space<vmem>>, %arg2: memref<32x16xbf16, #tpu.memory_space<vmem>>, %arg3: memref<32x1xf32, #tpu.memory_space<vmem>>, %arg4: memref<32x32xbf16, #tpu.memory_space<vmem>>, %arg5: memref<32x1xf32, #tpu.memory_space<vmem>>, %arg6: memref<32x8xf32, #tpu.memory_space<vmem>>) attributes {dimension_semantics = [#tpu.dimension_semantics<parallel>], iteration_bounds = array<i64: 1>, scalar_prefetch = 0 : i64, scratch_operands = 0 : i64, tpu.core_type = #tpu.core_type<tc>, window_params = [{transform_indices = @transform_0, window_bounds = array<i64: 16, 8>}, {pipeline_mode = #tpu.pipeline_mode<synchronous>, transform_indices = @transform_1, window_bounds = array<i64: 32, 16>}, {pipeline_mode = #tpu.pipeline_mode<synchronous>, transform_indices = @transform_2, window_bounds = array<i64: 32, 1>}, {pipeline_mode = #tpu.pipeline_mode<synchronous>, transform_indices = @transform_3, window_bounds = array<i64: 32, 32>}, {pipeline_mode = #tpu.pipeline_mode<synchronous>, transform_indices = @transform_4, window_bounds = array<i64: 32, 1>}, {transform_indices = @transform_5, window_bounds = array<i64: 32, 8>}]} {
    %c0 = arith.constant 0 : index
    %c0_0 = arith.constant 0 : index
    %0 = vector.load %arg2[%c0, %c0_0] : memref<32x16xbf16, #tpu.memory_space<vmem>>, vector<32x16xbf16>
    %c0_1 = arith.constant 0 : index
    %c0_2 = arith.constant 0 : index
    %1 = vector.load %arg1[%c0_1, %c0_2] : memref<16x8xbf16, #tpu.memory_space<vmem>>, vector<16x8xbf16>
    %cst = arith.constant dense<0.000000e+00> : vector<32x8xf32>
    %2 = tpu.matmul %0, %1, %cst {dimension_numbers = #tpu.dot_dimension_numbers<[1], [0], [0], [1], [0, 0, 1, 1], [], []>} : vector<32x16xbf16>, vector<16x8xbf16>, vector<32x8xf32> -> vector<32x8xf32>
    %c0_3 = arith.constant 0 : index
    %c0_4 = arith.constant 0 : index
    %3 = vector.load %arg3[%c0_3, %c0_4] : memref<32x1xf32, #tpu.memory_space<vmem>>, vector<32x1xf32>
    %4 = vector.broadcast %3 : vector<32x1xf32> to vector<32x8xf32>
    %5 = arith.addf %2, %4 : vector<32x8xf32>
    %cst_5 = arith.constant 0.000000e+00 : f32
    %6 = vector.broadcast %cst_5 : f32 to vector<32x8xf32>
    %7 = arith.maximumf %5, %6 : vector<32x8xf32>
    %8 = arith.truncf %7 : vector<32x8xf32> to vector<32x8xbf16>
    %c0_6 = arith.constant 0 : index
    %c0_7 = arith.constant 0 : index
    %9 = vector.load %arg4[%c0_6, %c0_7] : memref<32x32xbf16, #tpu.memory_space<vmem>>, vector<32x32xbf16>
    %cst_8 = arith.constant dense<0.000000e+00> : vector<32x8xf32>
    %10 = tpu.matmul %9, %8, %cst_8 {dimension_numbers = #tpu.dot_dimension_numbers<[1], [0], [0], [1], [0, 0, 1, 1], [], []>} : vector<32x32xbf16>, vector<32x8xbf16>, vector<32x8xf32> -> vector<32x8xf32>
    %c0_9 = arith.constant 0 : index
    %c0_10 = arith.constant 0 : index
    %11 = vector.load %arg5[%c0_9, %c0_10] : memref<32x1xf32, #tpu.memory_space<vmem>>, vector<32x1xf32>
    %12 = vector.broadcast %11 : vector<32x1xf32> to vector<32x8xf32>
    %13 = arith.addf %10, %12 : vector<32x8xf32>
    %cst_11 = arith.constant 0.000000e+00 : f32
    %14 = vector.broadcast %cst_11 : f32 to vector<32x8xf32>
    %15 = arith.maximumf %13, %14 : vector<32x8xf32>
    %c0_12 = arith.constant 0 : index
    %c0_13 = arith.constant 0 : index
    %16 = vector.load %arg6[%c0_12, %c0_13] : memref<32x8xf32, #tpu.memory_space<vmem>>, vector<32x8xf32>
    tpu.vector_store %arg6[%c0_12, %c0_13], %15 {strides = array<i32>} : memref<32x8xf32, #tpu.memory_space<vmem>>, vector<32x8xf32>,
    return
  }
  func.func @transform_0(%arg0: i32) -> (i32, i32) {
    %c0_i32 = arith.constant 0 : i32
    %c0_i32_0 = arith.constant 0 : i32
    return %c0_i32, %arg0 : i32, i32
  }
  func.func @transform_1(%arg0: i32) -> (i32, i32) {
    %c0_i32 = arith.constant 0 : i32
    %c0_i32_0 = arith.constant 0 : i32
    %c0_i32_1 = arith.constant 0 : i32
    return %c0_i32, %c0_i32_0 : i32, i32
  }
  func.func @transform_2(%arg0: i32) -> (i32, i32) {
    %c0_i32 = arith.constant 0 : i32
    %c0_i32_0 = arith.constant 0 : i32
    %c0_i32_1 = arith.constant 0 : i32
    return %c0_i32, %c0_i32_0 : i32, i32
  }
  func.func @transform_3(%arg0: i32) -> (i32, i32) {
    %c0_i32 = arith.constant 0 : i32
    %c0_i32_0 = arith.constant 0 : i32
    %c0_i32_1 = arith.constant 0 : i32
    return %c0_i32, %c0_i32_0 : i32, i32
  }
  func.func @transform_4(%arg0: i32) -> (i32, i32) {
    %c0_i32 = arith.constant 0 : i32
    %c0_i32_0 = arith.constant 0 : i32
    %c0_i32_1 = arith.constant 0 : i32
    return %c0_i32, %c0_i32_0 : i32, i32
  }
  func.func @transform_5(%arg0: i32) -> (i32, i32) {
    %c0_i32 = arith.constant 0 : i32
    %c0_i32_0 = arith.constant 0 : i32
    return %c0_i32, %arg0 : i32, i32
  }
}

</mosaic_0001>

<llo_original>
// kernel: encode_linear_forward.1
$region0: #{encode_linear_forward.1}
  #allocation0 [shape = 'u32[]', space=smem, size = 0x4, offset = 0x4, fixed_abs, tag = 'smem constant byte address 0x4 - core index']
  #allocation1 [shape = 'u32[72,128]{1,0:T(1,128)}', space=vmem, size = 0x9000, scoped, tag = 'internal scratch']
  %s0 = inlined_call_operand.vmem [shape: bf16[16,8], index: 0, kind: input, shape index: {}]
  %s1 = inlined_call_operand.vmem [shape: bf16[32,16], index: 1, kind: input, shape index: {}]
  %s2 = inlined_call_operand.vmem [shape: f32[32,1], index: 2, kind: input, shape index: {}]
  %s3 = inlined_call_operand.vmem [shape: bf16[32,32], index: 3, kind: input, shape index: {}]
  %s4 = inlined_call_operand.vmem [shape: f32[32,1], index: 4, kind: input, shape index: {}]
  %s5 = inlined_call_operand.vmem [shape: f32[32,8], index: 5, kind: output, shape index: {}]
  %s6 = sld [smem:[#allocation0]]
  $region30: #{encode_linear_forward.1} parent=0
    _
  %s8 = ssub.s32 1, %s6
  %s9 = scalar_select 0, %s8, %s6
  // Predicated region
  $region2: #{encode_linear_forward.1} parent=0 // pred_check
    _
  $region3: #{encode_linear_forward.1} parent=0 // pred_check_branch
    %11 = sbr.rel (0) target = $region5
  $region4: #{encode_linear_forward.1} parent=0 // pred_region
    _
  $region5: #{encode_linear_forward.1} parent=0 // pred_fallthru
    _
  // Predicated region
  $region6: #{encode_linear_forward.1} parent=0 // pred_check
    _
  $region7: #{encode_linear_forward.1} parent=0 // pred_check_branch
    %13 = sbr.rel (0) target = $region9
  $region8: #{encode_linear_forward.1} parent=0 // pred_region
    _
  $region9: #{encode_linear_forward.1} parent=0 // pred_fallthru
    _
  // Predicated region
  $region10: #{encode_linear_forward.1} parent=0 // pred_check
    _
  $region11: #{encode_linear_forward.1} parent=0 // pred_check_branch
    %15 = sbr.rel (0) target = $region13
  $region12: #{encode_linear_forward.1} parent=0 // pred_region
    _
  $region13: #{encode_linear_forward.1} parent=0 // pred_fallthru
    _
  // Predicated region
  $region14: #{encode_linear_forward.1} parent=0 // pred_check
    _
  $region15: #{encode_linear_forward.1} parent=0 // pred_check_branch
    %17 = sbr.rel (0) target = $region17
  $region16: #{encode_linear_forward.1} parent=0 // pred_region
    _
  $region17: #{encode_linear_forward.1} parent=0 // pred_fallthru
    _
  // Predicated region
  $region18: #{encode_linear_forward.1} parent=0 // pred_check
    _
  $region19: #{encode_linear_forward.1} parent=0 // pred_check_branch
    %19 = sbr.rel (0) target = $region21
  $region20: #{encode_linear_forward.1} parent=0 // pred_region
    _
  $region21: #{encode_linear_forward.1} parent=0 // pred_fallthru
    _
  %v21 = vld [vmem:[%s1] sm:$0xf]
  %v22 = vld [vmem:[%s1 + $0x4] sm:$0xf]
  %v23 = vld [vmem:[%s1 + $0x8] sm:$0xf]
  %v24 = vld [vmem:[%s1 + $0xc] sm:$0xf]
  %v25 = vld [vmem:[%s0] sm:$0xf]
  %v26 = vld [vmem:[%s0 + $0x4] sm:$0xf]
  %v27 = vld [vmem:[%s2] sm:$0xff]
  %v28 = vld [vmem:[%s2 + $0x8] sm:$0xff]
  %v29 = vld [vmem:[%s2 + $0x10] sm:$0xff]
  %v30 = vld [vmem:[%s2 + $0x18] sm:$0xff]
  %32 = vset.pattern.permute.xlu0 0
  %33 = vperm.xlu0 %32, %v27
  %v34 = vpop.permute.xlu0 %33
  %37 = vset.pattern.permute.xlu0 0
  %38 = vperm.xlu0 %37, %v28
  %v39 = vpop.permute.xlu0 %38
  %42 = vset.pattern.permute.xlu0 0
  %43 = vperm.xlu0 %42, %v29
  %v44 = vpop.permute.xlu0 %43
  %47 = vset.pattern.permute.xlu0 0
  %48 = vperm.xlu0 %47, %v30
  %v49 = vpop.permute.xlu0 %48
  %v55 = vunpack.c.l.b16 %v21
  %v56 = vunpack.c.l.b16 %v22
  %v57 = vunpack.c.l.b16 %v23
  %v58 = vunpack.c.l.b16 %v24
  %v59 = vpack.c.b16 %v56, %v55
  %v60 = vpack.c.b16 %v58, %v57
  %v63 = vunpack.c.l.b16 %v25
  %v64 = vunpack.c.l.b16 %v26
  %v65 = vpack.c.b16 %v64, %v63
  %vm67 = vcmask 130048
  %v69 = vsel %vm67, %v59, 0
  %v72 = vsel %vm67, %v60, 0
  %74 = vmatpush.bf16.msra.mxu0 0
  %75 = vmatpush.bf16.msra.mxu0 0
  %76 = vmatpush.bf16.msra.mxu0 0
  %77 = vmatpush.bf16.msra.mxu0 0
  %78 = vmatpush.bf16.msra.mxu0 0
  %79 = vmatpush.bf16.msra.mxu0 0
  %80 = vmatpush.bf16.msra.mxu0 0
  %81 = vmatpush.bf16.msra.mxu0 %v65
  %82 = vmatmul.bf16.gmra.mxu0 %v69
  %v83 = vpop.f32.mrf.mxu0
  %v84 = vadd.f32 %v34, %v83
  %v85 = vpop.f32.mrf.mxu0
  %v86 = vadd.f32 %v39, %v85
  %87 = vmatmul.bf16.gmra.mxu0 %v72
  %v88 = vpop.f32.mrf.mxu0
  %v89 = vadd.f32 %v44, %v88
  %v90 = vpop.f32.mrf.mxu0
  %v91 = vadd.f32 %v49, %v90
  %92 = vdwg.mxu0
  %v93 = vmax.f32 %v84, 0.0
  %v94 = vmax.f32 %v86, 0.0
  %v95 = vmax.f32 %v89, 0.0
  %v96 = vmax.f32 %v91, 0.0
  %v97 = vpack.c.bf16 %v94, %v93
  %v98 = vpack.c.bf16 %v96, %v95
  %v99 = vld [vmem:[%s3] sm:$0xf]
  %v100 = vld [vmem:[%s3 + $0x4] sm:$0xf]
  %v101 = vld [vmem:[%s3 + $0x8] sm:$0xf]
  %v102 = vld [vmem:[%s3 + $0xc] sm:$0xf]
  %v103 = vld [vmem:[%s4] sm:$0xff]
  %v104 = vld [vmem:[%s4 + $0x8] sm:$0xff]
  %v105 = vld [vmem:[%s4 + $0x10] sm:$0xff]
  %v106 = vld [vmem:[%s4 + $0x18] sm:$0xff]
  %108 = vset.pattern.permute.xlu0 0
  %109 = vperm.xlu0 %108, %v103
  %v110 = vpop.permute.xlu0 %109
  %113 = vset.pattern.permute.xlu0 0
  %114 = vperm.xlu0 %113, %v104
  %v115 = vpop.permute.xlu0 %114
  %118 = vset.pattern.permute.xlu0 0
  %119 = vperm.xlu0 %118, %v105
  %v120 = vpop.permute.xlu0 %119
  %123 = vset.pattern.permute.xlu0 0
  %124 = vperm.xlu0 %123, %v106
  %v125 = vpop.permute.xlu0 %124
  %v131 = vunpack.c.l.b16 %v99
  %v132 = vunpack.c.l.b16 %v100
  %v133 = vunpack.c.l.b16 %v101
  %v134 = vunpack.c.l.b16 %v102
  %v135 = vpack.c.b16 %v132, %v131
  %v136 = vpack.c.b16 %v134, %v133
  %vm137 = vcmask 261120
  %v139 = vsel %vm137, %v135, 0
  %v142 = vsel %vm137, %v136, 0
  %144 = vmatpush.bf16.msra.mxu0 0
  %145 = vmatpush.bf16.msra.mxu0 0
  %146 = vmatpush.bf16.msra.mxu0 0
  %147 = vmatpush.bf16.msra.mxu0 0
  %148 = vmatpush.bf16.msra.mxu0 0
  %149 = vmatpush.bf16.msra.mxu0 0
  %150 = vmatpush.bf16.msra.mxu0 %v98
  %151 = vmatpush.bf16.msra.mxu0 %v97
  %152 = vmatmul.bf16.gmra.mxu0 %v139
  %v153 = vpop.f32.mrf.mxu0
  %v154 = vadd.f32 %v110, %v153
  %v155 = vpop.f32.mrf.mxu0
  %v156 = vadd.f32 %v115, %v155
  %157 = vmatmul.bf16.gmra.mxu0 %v142
  %v158 = vpop.f32.mrf.mxu0
  %v159 = vadd.f32 %v120, %v158
  %v160 = vpop.f32.mrf.mxu0
  %v161 = vadd.f32 %v125, %v160
  %162 = vdwg.mxu0
  %v163 = vmax.f32 %v154, 0.0
  %v164 = vmax.f32 %v156, 0.0
  %v165 = vmax.f32 %v159, 0.0
  %v166 = vmax.f32 %v161, 0.0
  %vm167 = vcmask 64512
  %168 = vst.msk [vmem:[%s5] sm:$0xff] %vm167, %v163
  %169 = vst.msk [vmem:[%s5 + $0x8] sm:$0xff] %vm167, %v164
  %170 = vst.msk [vmem:[%s5 + $0x10] sm:$0xff] %vm167, %v165
  %171 = vst.msk [vmem:[%s5 + $0x18] sm:$0xff] %vm167, %v166
  // Predicated region
  $region22: #{encode_linear_forward.1} parent=0 // pred_check
    _
  $region23: #{encode_linear_forward.1} parent=0 // pred_check_branch
    %173 = sbr.rel (0) target = $region25
  $region24: #{encode_linear_forward.1} parent=0 // pred_region
    _
  $region25: #{encode_linear_forward.1} parent=0 // pred_fallthru
    _
  // Predicated region
  $region26: #{encode_linear_forward.1} parent=0 // pred_check
    _
  $region27: #{encode_linear_forward.1} parent=0 // pred_check_branch
    %175 = sbr.rel (0) target = $region29
  $region28: #{encode_linear_forward.1} parent=0 // pred_region
    _
  $region29: #{encode_linear_forward.1} parent=0 // pred_fallthru
    _

</llo_original>
